<compile_context>
chip_gen: v6e
topology: v6e:2x2x1
jax: 0.10.0
libtpu: 0.0.40
codegen_flags: <defaults>
</compile_context>

<pallas_src>
import functools

import jax
import jax.numpy as jnp
from jax import lax
from jax.experimental import pallas as pl
from jax.experimental.pallas import tpu as pltpu


def _policy_kernel(x_ref, w1_ref, w2_ref, out_ref, *, num_actions):
    # x_ref  : (TB, num_inputs)
    # w1_ref : (num_inputs, hidden)       -- pre-transposed in the wrapper
    # w2_ref : (hidden, num_actions)      -- pre-transposed in the wrapper
    # out_ref: (TB, num_actions)          -- narrow output block
    x = x_ref[...].astype(jnp.float32)
    w1 = w1_ref[...].astype(jnp.float32)
    w2 = w2_ref[...].astype(jnp.float32)

    # linear1 (no bias) + tanh; contraction is on the last dim of x so the MXU
    # is fed directly with no in-kernel transpose / relayout.
    h = jnp.tanh(jnp.dot(x, w1, preferred_element_type=jnp.float32))

    # linear2 (no bias).
    scores = jnp.dot(h, w2, preferred_element_type=jnp.float32)

    if num_actions == 2:
        # Exact identity: softmax([s0, s1]) = [sigmoid(s0-s1), 1-sigmoid(s0-s1)].
        # One EUP exp per row; no XLU max/sum, no padding mask.
        d = scores[:, 0:1] - scores[:, 1:2]            # (TB, 1)
        p0 = 1.0 / (1.0 + jnp.exp(-d))                 # exact divide
        col = lax.broadcasted_iota(jnp.int32, scores.shape, 1)
        out = jnp.where(col == 0, p0, 1.0 - p0)
    else:
        # General numerically-stable softmax over the last axis.
        m = jnp.max(scores, axis=-1, keepdims=True)
        e = jnp.exp(scores - m)
        out = e / jnp.sum(e, axis=-1, keepdims=True)   # exact divide

    out_ref[...] = out.astype(out_ref.dtype)


def prepare_policy_weights(w1, w2):
    """One-time layout prep: nn.Linear (out,in) weights -> MXU-friendly (in,out).

    Call this once at policy init / weight update and reuse the result; doing it
    per forward call adds two XLA ops of pure overhead on the small-batch path.
    """
    return jnp.asarray(w1).T, jnp.asarray(w2).T


def single_layer_policy_prepared(x, w1t, w2t, *, batch_tile=4096, input_dtype=None):
    """x: (B, num_inputs); w1t: (num_inputs, hidden); w2t: (hidden, num_actions)."""
    B, num_inputs = x.shape
    hidden, num_actions = w2t.shape
    assert w1t.shape == (num_inputs, hidden)

    # Optional narrow feed (use jnp.bfloat16 on v6e/v7x to halve x's HBM read
    # bytes; keep f32 on v5e).  The kernel upcasts to f32 internally.
    if input_dtype is not None:
        x = x.astype(input_dtype)

    kernel = functools.partial(_policy_kernel, num_actions=num_actions)
    out_shape = jax.ShapeDtypeStruct((B, num_actions), jnp.float32)

    if B <= batch_tile:
        # Small batch: single gridless invocation; whole arrays live in VMEM.
        # TODO(synk): at B of a few rows, plain XLA fusion of two tiny matmuls +
        # softmax beats any pallas_call's fixed launch overhead.
        return pl.pallas_call(kernel, out_shape=out_shape)(x, w1t, w2t)

    # Large batch: tile over B only.  Weights stay VMEM-resident (index_map
    # always block (0,0)); x/out tiles are auto double-buffered; the batch axis
    # is "parallel" so the v7x megacore can shard it (needs >= 2 grid steps).
    tb = max(8, (int(batch_tile) // 8) * 8)
    grid = (pl.cdiv(B, tb),)
    return pl.pallas_call(
        kernel,
        out_shape=out_shape,
        grid=grid,
        in_specs=[
            pl.BlockSpec((tb, num_inputs), lambda i: (i, 0)),
            pl.BlockSpec((num_inputs, hidden), lambda i: (0, 0)),
            pl.BlockSpec((hidden, num_actions), lambda i: (0, 0)),
        ],
        out_specs=pl.BlockSpec((tb, num_actions), lambda i: (i, 0)),
        compiler_params=pltpu.CompilerParams(
            dimension_semantics=("parallel",),
        ),
    )(x, w1t, w2t)


def single_layer_policy(x, w1, w2, **kw):
    """Convenience wrapper taking nn.Linear-layout weights (out_features, in_features)."""
    w1t, w2t = prepare_policy_weights(w1, w2)
    return single_layer_policy_prepared(x, w1t, w2t, **kw)


def _reference(x, w1, w2):
    h = jnp.tanh(x @ w1.T)
    s = h @ w2.T
    return jax.nn.softmax(s, axis=-1)


if __name__ == "__main__":
    # Small shapes consistent with the module: a CartPole-like policy.
    num_inputs = 4
    hidden_size = 32
    num_actions = 2   # action_space.n

    key = jax.random.PRNGKey(0)
    kx, k1, k2, kx2, k3, kx3 = jax.random.split(key, 6)

    # nn.Linear-like uniform init scale.
    w1 = jax.random.uniform(
        k1, (hidden_size, num_inputs), jnp.float32,
        minval=-1.0 / jnp.sqrt(num_inputs), maxval=1.0 / jnp.sqrt(num_inputs))
    w2 = jax.random.uniform(
        k2, (num_actions, hidden_size), jnp.float32,
        minval=-1.0 / jnp.sqrt(hidden_size), maxval=1.0 / jnp.sqrt(hidden_size))

    # --- path 1: small batch, gridless, 2-action sigmoid fast path ---
    batch = 8
    x = jax.random.normal(kx, (batch, num_inputs), dtype=jnp.float32)
    out = jax.block_until_ready(single_layer_policy(x, w1, w2))
    ref = _reference(x, w1, w2)
    assert out.shape == (batch, num_actions)
    assert jnp.allclose(out, ref, atol=2e-3, rtol=2e-3), "mismatch vs reference (small batch)"
    assert jnp.allclose(jnp.sum(out, axis=-1), 1.0, atol=1e-4), "softmax rows must sum to 1"

    # --- path 2: batch-tiled 'parallel' grid with a partial edge block ---
    # (batch_tile shrunk here only to exercise the grid path at test sizes;
    # production default 4096 keeps step overhead negligible.)
    batch2 = 600  # deliberately not a multiple of the 256 tile -> partial edge block
    x2 = jax.random.normal(kx2, (batch2, num_inputs), dtype=jnp.float32)
    w1t, w2t = prepare_policy_weights(w1, w2)   # cached once, as at policy init
    out2 = jax.block_until_ready(
        single_layer_policy_prepared(x2, w1t, w2t, batch_tile=256))
    ref2 = _reference(x2, w1, w2)
    assert out2.shape == (batch2, num_actions)
    assert jnp.allclose(out2, ref2, atol=2e-3, rtol=2e-3), "mismatch vs reference (tiled batch)"
    assert jnp.allclose(jnp.sum(out2, axis=-1), 1.0, atol=1e-4), "softmax rows must sum to 1"

    # --- path 3: general softmax path (num_actions != 2), gridless ---
    num_actions_b = 6
    w2b = jax.random.uniform(
        k3, (num_actions_b, hidden_size), jnp.float32,
        minval=-1.0 / jnp.sqrt(hidden_size), maxval=1.0 / jnp.sqrt(hidden_size))
    batch3 = 16
    x3 = jax.random.normal(kx3, (batch3, num_inputs), dtype=jnp.float32)
    out3 = jax.block_until_ready(single_layer_policy(x3, w1, w2b))
    ref3 = _reference(x3, w1, w2b)
    assert out3.shape == (batch3, num_actions_b)
    assert jnp.allclose(out3, ref3, atol=2e-3, rtol=2e-3), "mismatch vs reference (6 actions)"
    assert jnp.allclose(jnp.sum(out3, axis=-1), 1.0, atol=1e-4), "softmax rows must sum to 1"

    print("KERNEL_OK")
</pallas_src>

<mosaic_0001>
module attributes {stable_mosaic.version = 11 : i64} {
  func.func @_policy_kernel(%arg0: memref<8x4xf32, #tpu.memory_space<vmem>>, %arg1: memref<4x32xf32, #tpu.memory_space<vmem>>, %arg2: memref<32x2xf32, #tpu.memory_space<vmem>>, %arg3: memref<8x2xf32, #tpu.memory_space<vmem>>) attributes {dimension_semantics = [], scalar_prefetch = 0 : i64, scratch_operands = 0 : i64, tpu.core_type = #tpu.core_type<tc>} {
    %c0 = arith.constant 0 : index
    %c0_0 = arith.constant 0 : index
    %0 = vector.load %arg0[%c0, %c0_0] : memref<8x4xf32, #tpu.memory_space<vmem>>, vector<8x4xf32>
    %c0_1 = arith.constant 0 : index
    %c0_2 = arith.constant 0 : index
    %1 = vector.load %arg1[%c0_1, %c0_2] : memref<4x32xf32, #tpu.memory_space<vmem>>, vector<4x32xf32>
    %c0_3 = arith.constant 0 : index
    %c0_4 = arith.constant 0 : index
    %2 = vector.load %arg2[%c0_3, %c0_4] : memref<32x2xf32, #tpu.memory_space<vmem>>, vector<32x2xf32>
    %cst = arith.constant dense<0.000000e+00> : vector<8x32xf32>
    %3 = tpu.matmul %0, %1, %cst {dimension_numbers = #tpu.dot_dimension_numbers<[1], [0], [0], [1], [0, 0, 1, 1], [], []>} : vector<8x4xf32>, vector<4x32xf32>, vector<8x32xf32> -> vector<8x32xf32>
    %4 = math.tanh %3 : vector<8x32xf32>
    %cst_5 = arith.constant dense<0.000000e+00> : vector<8x2xf32>
    %5 = tpu.matmul %4, %2, %cst_5 {dimension_numbers = #tpu.dot_dimension_numbers<[1], [0], [0], [1], [0, 0, 1, 1], [], []>} : vector<8x32xf32>, vector<32x2xf32>, vector<8x2xf32> -> vector<8x2xf32>
    %6 = vector.extract_strided_slice %5 {offsets = [0, 0], sizes = [8, 1], strides = [1, 1]} : vector<8x2xf32> to vector<8x1xf32>
    %7 = vector.extract_strided_slice %5 {offsets = [0, 1], sizes = [8, 1], strides = [1, 1]} : vector<8x2xf32> to vector<8x1xf32>
    %8 = arith.subf %6, %7 : vector<8x1xf32>
    %cst_6 = arith.constant 0.000000e+00 : f32
    %9 = vector.broadcast %cst_6 : f32 to vector<8x1xf32>
    %10 = arith.subf %9, %8 : vector<8x1xf32>
    %11 = math.exp %10 : vector<8x1xf32>
    %cst_7 = arith.constant 1.000000e+00 : f32
    %12 = vector.broadcast %cst_7 : f32 to vector<8x1xf32>
    %13 = arith.addf %12, %11 : vector<8x1xf32>
    %cst_8 = arith.constant 1.000000e+00 : f32
    %14 = vector.broadcast %cst_8 : f32 to vector<8x1xf32>
    %15 = arith.divf %14, %13 : vector<8x1xf32>
    %16 = tpu.iota {dimensions = array<i32: 1>} : vector<8x2xi32>
    %c0_i32 = arith.constant 0 : i32
    %17 = vector.broadcast %c0_i32 : i32 to vector<8x2xi32>
    %18 = arith.cmpi eq, %16, %17 : vector<8x2xi32>
    %cst_9 = arith.constant 1.000000e+00 : f32
    %19 = vector.broadcast %cst_9 : f32 to vector<8x1xf32>
    %20 = arith.subf %19, %15 : vector<8x1xf32>
    %21 = vector.shape_cast %15 : vector<8x1xf32> to vector<8x1xf32>
    %22 = vector.broadcast %21 : vector<8x1xf32> to vector<8x2xf32>
    %23 = vector.shape_cast %20 : vector<8x1xf32> to vector<8x1xf32>
    %24 = vector.broadcast %23 : vector<8x1xf32> to vector<8x2xf32>
    %25 = arith.select %18, %22, %24 : vector<8x2xi1>, vector<8x2xf32>
    %c0_10 = arith.constant 0 : index
    %c0_11 = arith.constant 0 : index
    %26 = vector.load %arg3[%c0_10, %c0_11] : memref<8x2xf32, #tpu.memory_space<vmem>>, vector<8x2xf32>
    tpu.vector_store %arg3[%c0_10, %c0_11], %25 {strides = array<i32>} : memref<8x2xf32, #tpu.memory_space<vmem>>, vector<8x2xf32>,
    return
  }
}

</mosaic_0001>

<llo_original>
// kernel: tpu_custom_call.1
$region0: #{tpu_custom_call.1}
  #allocation0 [shape = 'u32[]', space=smem, size = 0x4, offset = 0x4, fixed_abs, tag = 'smem constant byte address 0x4 - core index']
  #allocation1 [shape = 'u32[144,128]{1,0:T(1,128)}', space=vmem, size = 0x12000, scoped, tag = 'internal scratch']
  %s0 = inlined_call_operand.vmem [shape: f32[8,4], index: 0, kind: input, shape index: {}]
  %s1 = inlined_call_operand.vmem [shape: f32[4,32], index: 1, kind: input, shape index: {}]
  %s2 = inlined_call_operand.vmem [shape: f32[32,2], index: 2, kind: input, shape index: {}]
  %s3 = inlined_call_operand.vmem [shape: f32[8,2], index: 3, kind: output, shape index: {}]
  %s4 = sld [smem:[#allocation0]]
  $region22: #{tpu_custom_call.1} parent=0
    _
  %s6 = ssub.s32 1, %s4
  %s7 = scalar_select 0, %s6, %s4
  // Predicated region
  $region2: #{tpu_custom_call.1} parent=0 // pred_check
    _
  $region3: #{tpu_custom_call.1} parent=0 // pred_check_branch
    %9 = sbr.rel (0) target = $region5
  $region4: #{tpu_custom_call.1} parent=0 // pred_region
    _
  $region5: #{tpu_custom_call.1} parent=0 // pred_fallthru
    _
  // Predicated region
  $region6: #{tpu_custom_call.1} parent=0 // pred_check
    _
  $region7: #{tpu_custom_call.1} parent=0 // pred_check_branch
    %11 = sbr.rel (0) target = $region9
  $region8: #{tpu_custom_call.1} parent=0 // pred_region
    _
  $region9: #{tpu_custom_call.1} parent=0 // pred_fallthru
    _
  // Predicated region
  $region10: #{tpu_custom_call.1} parent=0 // pred_check
    _
  $region11: #{tpu_custom_call.1} parent=0 // pred_check_branch
    %13 = sbr.rel (0) target = $region13
  $region12: #{tpu_custom_call.1} parent=0 // pred_region
    _
  $region13: #{tpu_custom_call.1} parent=0 // pred_fallthru
    _
  %v14 = vld [vmem:[%s0] sm:$0xff]
  %v15 = vld [vmem:[%s1] sm:$0xf]
  %v16 = vld [vmem:[%s2] sm:$0xff]
  %v17 = vld [vmem:[%s2 + $0x8] sm:$0xff]
  %v18 = vld [vmem:[%s2 + $0x10] sm:$0xff]
  %v19 = vld [vmem:[%s2 + $0x18] sm:$0xff]
  %vm20 = vcmask 31744
  %v22 = vsel %vm20, %v14, 0
  %vm24 = vcmask 1043456
  %v26 = vsel %vm24, %v15, 0
  %28 = vmatprep.subr.mxu0 0.0
  %29 = vmatpush1.msra.mxu0 0.0
  %30 = vmatprep.subr.mxu0 0.0
  %31 = vmatpush1.msra.mxu0 0.0
  %32 = vmatprep.subr.mxu0 0.0
  %33 = vmatpush1.msra.mxu0 0.0
  %34 = vmatprep.subr.mxu0 0.0
  %35 = vmatpush1.msra.mxu0 0.0
  %36 = vmatprep.subr.mxu0 0.0
  %37 = vmatpush1.msra.mxu0 0.0
  %38 = vmatprep.subr.mxu0 0.0
  %39 = vmatpush1.msra.mxu0 0.0
  %40 = vmatprep.subr.mxu0 0.0
  %41 = vmatpush1.msra.mxu0 0.0
  %42 = vmatprep.subr.mxu0 0.0
  %43 = vmatpush1.msra.mxu0 0.0
  %44 = vmatprep.subr.mxu0 0.0
  %45 = vmatpush1.msra.mxu0 0.0
  %46 = vmatprep.subr.mxu0 0.0
  %47 = vmatpush1.msra.mxu0 0.0
  %48 = vmatprep.subr.mxu0 0.0
  %49 = vmatpush1.msra.mxu0 0.0
  %50 = vmatprep.subr.mxu0 0.0
  %51 = vmatpush1.msra.mxu0 0.0
  %52 = vmatprep.subr.mxu0 0.0
  %53 = vmatpush1.msra.mxu0 0.0
  %54 = vmatprep.subr.mxu0 0.0
  %55 = vmatpush1.msra.mxu0 0.0
  %56 = vmatprep.subr.mxu0 0.0
  %57 = vmatpush1.msra.mxu0 0.0
  %58 = vmatprep.subr.mxu0 0.0
  %59 = vmatpush1.msra.mxu0 %v26
  %60 = vmatprep.subr.mxu0 0.0
  %61 = vmatpush2.msra.mxu0 0.0
  %62 = vmatprep.subr.mxu0 0.0
  %63 = vmatpush2.msra.mxu0 0.0
  %64 = vmatprep.subr.mxu0 0.0
  %65 = vmatpush2.msra.mxu0 0.0
  %66 = vmatprep.subr.mxu0 0.0
  %67 = vmatpush2.msra.mxu0 0.0
  %68 = vmatprep.subr.mxu0 0.0
  %69 = vmatpush2.msra.mxu0 0.0
  %70 = vmatprep.subr.mxu0 0.0
  %71 = vmatpush2.msra.mxu0 0.0
  %72 = vmatprep.subr.mxu0 0.0
  %73 = vmatpush2.msra.mxu0 0.0
  %74 = vmatprep.subr.mxu0 0.0
  %75 = vmatpush2.msra.mxu0 0.0
  %76 = vmatprep.subr.mxu0 0.0
  %77 = vmatpush2.msra.mxu0 0.0
  %78 = vmatprep.subr.mxu0 0.0
  %79 = vmatpush2.msra.mxu0 0.0
  %80 = vmatprep.subr.mxu0 0.0
  %81 = vmatpush2.msra.mxu0 0.0
  %82 = vmatprep.subr.mxu0 0.0
  %83 = vmatpush2.msra.mxu0 0.0
  %84 = vmatprep.subr.mxu0 0.0
  %85 = vmatpush2.msra.mxu0 0.0
  %86 = vmatprep.subr.mxu0 0.0
  %87 = vmatpush2.msra.mxu0 0.0
  %88 = vmatprep.subr.mxu0 0.0
  %89 = vmatpush2.msra.mxu0 0.0
  %90 = vmatprep.subr.mxu0 0.0
  %91 = vmatpush2.msra.mxu0 0.0
  %92 = vmatprep.mubr.f32.mxu0 0.0
  %93 = vmatmul.mubr.f32.gmra.mxu0 %v22
  %v94 = vpop.f32.mrf.mxu0
  %v95 = vadd.f32 0.0, %v94
  %v96 = vpop.f32.mrf.mxu0
  %97 = vdwg.mxu0
  %v98 = vtanh.pop %v95
  %vm99 = vcmask 261120
  %v101 = vsel %vm99, %v98, 0
  %103 = vmatprep.subr.mxu0 0.0
  %104 = vmatpush1.msra.mxu0 0.0
  %105 = vmatprep.subr.mxu0 0.0
  %106 = vmatpush1.msra.mxu0 0.0
  %107 = vmatprep.subr.mxu0 0.0
  %108 = vmatpush1.msra.mxu0 0.0
  %109 = vmatprep.subr.mxu0 0.0
  %110 = vmatpush1.msra.mxu0 0.0
  %111 = vmatprep.subr.mxu0 0.0
  %112 = vmatpush1.msra.mxu0 0.0
  %113 = vmatprep.subr.mxu0 0.0
  %114 = vmatpush1.msra.mxu0 0.0
  %115 = vmatprep.subr.mxu0 0.0
  %116 = vmatpush1.msra.mxu0 0.0
  %117 = vmatprep.subr.mxu0 0.0
  %118 = vmatpush1.msra.mxu0 0.0
  %119 = vmatprep.subr.mxu0 0.0
  %120 = vmatpush1.msra.mxu0 0.0
  %121 = vmatprep.subr.mxu0 0.0
  %122 = vmatpush1.msra.mxu0 0.0
  %123 = vmatprep.subr.mxu0 0.0
  %124 = vmatpush1.msra.mxu0 0.0
  %125 = vmatprep.subr.mxu0 0.0
  %126 = vmatpush1.msra.mxu0 0.0
  %127 = vmatprep.subr.mxu0 0.0
  %128 = vmatpush1.msra.mxu0 %v19
  %129 = vmatprep.subr.mxu0 0.0
  %130 = vmatpush1.msra.mxu0 %v18
  %131 = vmatprep.subr.mxu0 0.0
  %132 = vmatpush1.msra.mxu0 %v17
  %133 = vmatprep.subr.mxu0 0.0
  %134 = vmatpush1.msra.mxu0 %v16
  %135 = vmatprep.subr.mxu0 0.0
  %136 = vmatpush2.msra.mxu0 0.0
  %137 = vmatprep.subr.mxu0 0.0
  %138 = vmatpush2.msra.mxu0 0.0
  %139 = vmatprep.subr.mxu0 0.0
  %140 = vmatpush2.msra.mxu0 0.0
  %141 = vmatprep.subr.mxu0 0.0
  %142 = vmatpush2.msra.mxu0 0.0
  %143 = vmatprep.subr.mxu0 0.0
  %144 = vmatpush2.msra.mxu0 0.0
  %145 = vmatprep.subr.mxu0 0.0
  %146 = vmatpush2.msra.mxu0 0.0
  %147 = vmatprep.subr.mxu0 0.0
  %148 = vmatpush2.msra.mxu0 0.0
  %149 = vmatprep.subr.mxu0 0.0
  %150 = vmatpush2.msra.mxu0 0.0
  %151 = vmatprep.subr.mxu0 0.0
  %152 = vmatpush2.msra.mxu0 0.0
  %153 = vmatprep.subr.mxu0 0.0
  %154 = vmatpush2.msra.mxu0 0.0
  %155 = vmatprep.subr.mxu0 0.0
  %156 = vmatpush2.msra.mxu0 0.0
  %157 = vmatprep.subr.mxu0 0.0
  %158 = vmatpush2.msra.mxu0 0.0
  %159 = vmatprep.subr.mxu0 0.0
  %160 = vmatpush2.msra.mxu0 0.0
  %161 = vmatprep.subr.mxu0 0.0
  %162 = vmatpush2.msra.mxu0 0.0
  %163 = vmatprep.subr.mxu0 0.0
  %164 = vmatpush2.msra.mxu0 0.0
  %165 = vmatprep.subr.mxu0 0.0
  %166 = vmatpush2.msra.mxu0 0.0
  %167 = vmatprep.mubr.f32.mxu0 0.0
  %168 = vmatmul.mubr.f32.gmra.mxu0 %v101
  %v169 = vpop.f32.mrf.mxu0
  %v170 = vadd.f32 0.0, %v169
  %v171 = vpop.f32.mrf.mxu0
  %172 = vdwg.mxu0
  %174 = vrot.lane.b32.xlu0 %v170, 127
  %v175 = vpop.permute.xlu0 %174
  %v177 = vsub.f32 %v170, %v175
  %v178 = vsub.f32 0.0, %v177
  %v179 = vmul.f32 %v178, 1.442695
  %v180 = vpow.pop %v179
  %v181 = vadd.f32 %v180, 1.0
  %v182 = vrcp.pop %v181
  %v183 = vmul.f32 1.0, %v182
  %v184 = vlaneseq
  %v185 = vand.u32 %v184, 127
  %vm186 = vcmp.eq.s32.totalorder %v185, 0
  %v187 = vsub.f32 1.0, %v183
  %189 = vset.pattern.permute.xlu0 0
  %190 = vperm.xlu0 %189, %v183
  %v191 = vpop.permute.xlu0 %190
  %194 = vset.pattern.permute.xlu0 0
  %195 = vperm.xlu0 %194, %v187
  %v196 = vpop.permute.xlu0 %195
  %v198 = vsel %vm186, %v191, %v196
  %vm199 = vcmask 15360
  %200 = vst.msk [vmem:[%s3] sm:$0xff] %vm199, %v198
  // Predicated region
  $region14: #{tpu_custom_call.1} parent=0 // pred_check
    _
  $region15: #{tpu_custom_call.1} parent=0 // pred_check_branch
    %202 = sbr.rel (0) target = $region17
  $region16: #{tpu_custom_call.1} parent=0 // pred_region
    _
  $region17: #{tpu_custom_call.1} parent=0 // pred_fallthru
    _
  // Predicated region
  $region18: #{tpu_custom_call.1} parent=0 // pred_check
    _
  $region19: #{tpu_custom_call.1} parent=0 // pred_check_branch
    %204 = sbr.rel (0) target = $region21
  $region20: #{tpu_custom_call.1} parent=0 // pred_region
    _
  $region21: #{tpu_custom_call.1} parent=0 // pred_fallthru
    _

</llo_original>
